<compile_context>
chip_gen: v7x
topology: tpu7x:2x2x1
jax: 0.10.0
libtpu: 0.0.40
codegen_flags: <defaults>
</compile_context>

<pallas_src>
import functools
import math

import jax
import jax.numpy as jnp
from jax.experimental import pallas as pl
from jax.experimental.pallas import tpu as pltpu

HIDDEN = 768
N_LAYERS = 2
N_HEADS = 12
HEAD_DIM = HIDDEN // N_HEADS
INTERMEDIATE = 3072
VOCAB = 128
MAX_POS = 32
TYPE_VOCAB = 2
LN_EPS = 1e-12
BN_EPS = 1e-5
_GELU_C = math.sqrt(2.0 / math.pi)

# Classifier head widths (real -> lane-padded).
C1, C1P = 300, 384
C2, C2P = 100, 128


def _vmem_limit_bytes():
    """Per-generation VMEM budget: ~3/4 of physical capacity, capped at 96 MiB."""
    try:
        cap = int(pltpu.get_tpu_info().vmem_capacity_bytes)
    except Exception:  # be conservative (v7x floor) if the query is unavailable
        cap = 64 * 1024 * 1024
    return min((cap * 3) // 4, 96 * 1024 * 1024)


_VMEM_LIMIT = _vmem_limit_bytes()


def _cparams(dims):
    return pltpu.CompilerParams(dimension_semantics=dims,
                                vmem_limit_bytes=_VMEM_LIMIT)


def _tile(dim, pref, align):
    """Largest aligned tile <= pref that evenly divides dim (full dim if none)."""
    if dim <= pref:
        return dim
    t = (pref // align) * align
    while t >= align:
        if dim % t == 0:
            return t
        t -= align
    return dim


def _apply_act(y, act):
    if act == "relu":
        return jnp.maximum(y, 0.0)
    if act == "tanh":
        return jnp.tanh(y)
    if act == "gelu":
        # TODO(synk): HF BERT uses exact erf GELU; tanh approximation used here.
        return 0.5 * y * (1.0 + jnp.tanh(_GELU_C * (y + 0.044715 * y * y * y)))
    return y


# ---------------------------------------------------------------------------
# Tiled linear: y = act(x @ w + b)   (x, w bf16; accumulation f32; output bf16)
# ---------------------------------------------------------------------------
def _linear_single_kernel(x_ref, w_ref, b_ref, o_ref, *, act):
    y = jnp.dot(x_ref[...], w_ref[...], preferred_element_type=jnp.float32) + b_ref[...]
    o_ref[...] = _apply_act(y, act).astype(o_ref.dtype)


def _linear_acc_kernel(x_ref, w_ref, b_ref, o_ref, acc_ref, *, act):
    @pl.when(pl.program_id(2) == 0)
    def _():
        acc_ref[...] = jnp.zeros_like(acc_ref)

    acc_ref[...] += jnp.dot(x_ref[...], w_ref[...], preferred_element_type=jnp.float32)

    @pl.when(pl.program_id(2) == pl.num_programs(2) - 1)
    def _():
        y = acc_ref[...] + b_ref[...]
        o_ref[...] = _apply_act(y, act).astype(o_ref.dtype)


def linear(x, w, b, act="none", tm=512, tn=3072, tk=3072):
    """x:[M,K] bf16, w:[K,N] bf16, b:[1,N] f32 -> [M,N] bf16."""
    M, K = x.shape
    N = w.shape[1]
    tm = _tile(M, tm, 8)
    tn = _tile(N, tn, 128)
    tk = _tile(K, tk, 128)
    nk = K // tk
    if nk == 1:
        # Single-K-step fast path: no accumulator scratch, direct store.
        return pl.pallas_call(
            functools.partial(_linear_single_kernel, act=act),
            out_shape=jax.ShapeDtypeStruct((M, N), jnp.bfloat16),
            grid=(M // tm, N // tn),
            in_specs=[
                pl.BlockSpec((tm, K), lambda i, j: (i, 0)),
                pl.BlockSpec((K, tn), lambda i, j: (0, j)),
                pl.BlockSpec((1, tn), lambda i, j: (0, j)),
            ],
            out_specs=pl.BlockSpec((tm, tn), lambda i, j: (i, j)),
            compiler_params=_cparams(("parallel", "parallel")),
        )(x, w, b)
    return pl.pallas_call(
        functools.partial(_linear_acc_kernel, act=act),
        out_shape=jax.ShapeDtypeStruct((M, N), jnp.bfloat16),
        grid=(M // tm, N // tn, nk),
        in_specs=[
            pl.BlockSpec((tm, tk), lambda i, j, k: (i, k)),
            pl.BlockSpec((tk, tn), lambda i, j, k: (k, j)),
            pl.BlockSpec((1, tn), lambda i, j, k: (0, j)),
        ],
        out_specs=pl.BlockSpec((tm, tn), lambda i, j, k: (i, j)),
        scratch_shapes=[pltpu.VMEM((tm, tn), jnp.float32)],
        compiler_params=_cparams(("parallel", "parallel", "arbitrary")),
    )(x, w, b)


# ---------------------------------------------------------------------------
# Fused linear + residual add + LayerNorm (output width = HIDDEN, one N tile)
# ---------------------------------------------------------------------------
def _linres_ln_single_kernel(x_ref, w_ref, b_ref, res_ref, g_ref, beta_ref, o_ref):
    y = jnp.dot(x_ref[...], w_ref[...], preferred_element_type=jnp.float32)
    y = y + b_ref[...] + res_ref[...].astype(jnp.float32)
    mu = jnp.mean(y, axis=-1, keepdims=True)
    var = jnp.mean((y - mu) ** 2, axis=-1, keepdims=True)
    yn = (y - mu) * jax.lax.rsqrt(var + LN_EPS)
    o_ref[...] = (yn * g_ref[...] + beta_ref[...]).astype(o_ref.dtype)


def _linres_ln_acc_kernel(x_ref, w_ref, b_ref, res_ref, g_ref, beta_ref, o_ref, acc_ref):
    k = pl.program_id(1)

    @pl.when(k == 0)
    def _():
        acc_ref[...] = jnp.zeros_like(acc_ref)

    acc_ref[...] += jnp.dot(x_ref[...], w_ref[...], preferred_element_type=jnp.float32)

    @pl.when(k == pl.num_programs(1) - 1)
    def _():
        y = acc_ref[...] + b_ref[...] + res_ref[...].astype(jnp.float32)
        mu = jnp.mean(y, axis=-1, keepdims=True)
        var = jnp.mean((y - mu) ** 2, axis=-1, keepdims=True)
        yn = (y - mu) * jax.lax.rsqrt(var + LN_EPS)
        o_ref[...] = (yn * g_ref[...] + beta_ref[...]).astype(o_ref.dtype)


def linear_residual_layernorm(x, w, b, res, g, beta, tm=512, tk=3072):
    """LayerNorm(res + x @ w + b); x:[M,K] bf16, w:[K,H] bf16, res:[M,H] bf16 -> bf16."""
    M, K = x.shape
    N = w.shape[1]
    tm = _tile(M, tm, 8)
    tk = _tile(K, tk, 128)
    nk = K // tk
    if nk == 1:
        return pl.pallas_call(
            _linres_ln_single_kernel,
            out_shape=jax.ShapeDtypeStruct((M, N), jnp.bfloat16),
            grid=(M // tm,),
            in_specs=[
                pl.BlockSpec((tm, K), lambda i: (i, 0)),
                pl.BlockSpec((K, N), lambda i: (0, 0)),
                pl.BlockSpec((1, N), lambda i: (0, 0)),
                pl.BlockSpec((tm, N), lambda i: (i, 0)),
                pl.BlockSpec((1, N), lambda i: (0, 0)),
                pl.BlockSpec((1, N), lambda i: (0, 0)),
            ],
            out_specs=pl.BlockSpec((tm, N), lambda i: (i, 0)),
            compiler_params=_cparams(("parallel",)),
        )(x, w, b, res, g, beta)
    return pl.pallas_call(
        _linres_ln_acc_kernel,
        out_shape=jax.ShapeDtypeStruct((M, N), jnp.bfloat16),
        grid=(M // tm, nk),
        in_specs=[
            pl.BlockSpec((tm, tk), lambda i, k: (i, k)),
            pl.BlockSpec((tk, N), lambda i, k: (k, 0)),
            pl.BlockSpec((1, N), lambda i, k: (0, 0)),
            pl.BlockSpec((tm, N), lambda i, k: (i, 0)),
            pl.BlockSpec((1, N), lambda i, k: (0, 0)),
            pl.BlockSpec((1, N), lambda i, k: (0, 0)),
        ],
        out_specs=pl.BlockSpec((tm, N), lambda i, k: (i, 0)),
        scratch_shapes=[pltpu.VMEM((tm, N), jnp.float32)],
        compiler_params=_cparams(("parallel", "arbitrary")),
    )(x, w, b, res, g, beta)


# ---------------------------------------------------------------------------
# Fused embedding-sum + LayerNorm (pos-emb fed as a resident [S,H] block)
# ---------------------------------------------------------------------------
def _embed_ln_kernel(we_ref, te_ref, pe_ref, g_ref, b_ref, o_ref):
    x = we_ref[...] + te_ref[...] + pe_ref[...]
    mu = jnp.mean(x, axis=-1, keepdims=True)
    var = jnp.mean((x - mu) ** 2, axis=-1, keepdims=True)
    y = (x - mu) * jax.lax.rsqrt(var + LN_EPS)
    o_ref[...] = (y * g_ref[...] + b_ref[...]).astype(o_ref.dtype)


def embed_layernorm(we, te, pe, g, b, B, S):
    """we, te: [B*S, H] f32 gathers; pe: [S, H] f32 -> [B*S, H] bf16."""
    M, H = we.shape
    if S % 8 == 0:
        grid = (B,)
        row = pl.BlockSpec((S, H), lambda i: (i, 0))
        pe_spec = pl.BlockSpec((S, H), lambda i: (0, 0))
    else:
        # TODO(synk): S not sublane-aligned; fall back to a single full-array block.
        pe = jnp.tile(pe, (B, 1))
        grid = (1,)
        row = pl.BlockSpec((M, H), lambda i: (0, 0))
        pe_spec = row
    vec = pl.BlockSpec((1, H), lambda i: (0, 0))
    return pl.pallas_call(
        _embed_ln_kernel,
        out_shape=jax.ShapeDtypeStruct((M, H), jnp.bfloat16),
        grid=grid,
        in_specs=[row, row, pe_spec, vec, vec],
        out_specs=row,
        compiler_params=_cparams(("parallel",)),
    )(we, te, pe, g, b)


# ---------------------------------------------------------------------------
# Attention: grid = (B, n_heads // 2); each step works on a lane-aligned
# 128-wide head-pair slab of Q/K/V and stores a lane-dense 128-wide output slice.
# The 1/sqrt(head_dim) scale is folded into wqkv at init.
# ---------------------------------------------------------------------------
def _attn_pair_kernel(q_ref, k_ref, v_ref, bias_ref, o_ref, *, head_dim):
    q = q_ref[0]          # (S, 128) bf16, already scaled
    k = k_ref[0]          # (S, 128) bf16
    v = v_ref[0]          # (S, 128) bf16
    bias = bias_ref[0]    # (1, S) f32 additive key mask, broadcast over query rows
    outs = []
    for h in range(2):
        lo = h * head_dim
        qh = q[:, lo:lo + head_dim]
        kh = k[:, lo:lo + head_dim]
        vh = v[:, lo:lo + head_dim]
        s = jax.lax.dot_general(
            qh, kh, (((1,), (1,)), ((), ())), preferred_element_type=jnp.float32
        ) + bias
        m = jnp.max(s, axis=-1, keepdims=True)
        p = jnp.exp(s - m)
        p = p * pl.reciprocal(jnp.sum(p, axis=-1, keepdims=True), approx=True)
        outs.append(jnp.dot(p.astype(jnp.bfloat16), vh,
                            preferred_element_type=jnp.float32))
    o_ref[0] = jnp.concatenate(outs, axis=-1).astype(o_ref.dtype)


def attention(qkv, mask_bias):
    """qkv:[B,S,3H] bf16 (fused Q|K|V projection), mask_bias:[B,1,S] f32 -> [B,S,H] bf16."""
    B, S, threeH = qkv.shape
    H = threeH // 3
    n_pairs = N_HEADS // 2
    pw = 2 * HEAD_DIM  # 128-lane head-pair width
    return pl.pallas_call(
        functools.partial(_attn_pair_kernel, head_dim=HEAD_DIM),
        out_shape=jax.ShapeDtypeStruct((B, S, H), jnp.bfloat16),
        grid=(B, n_pairs),
        in_specs=[
            pl.BlockSpec((1, S, pw), lambda b, p: (b, 0, p)),                 # Q pair
            pl.BlockSpec((1, S, pw), lambda b, p: (b, 0, n_pairs + p)),       # K pair
            pl.BlockSpec((1, S, pw), lambda b, p: (b, 0, 2 * n_pairs + p)),   # V pair
            pl.BlockSpec((1, 1, S), lambda b, p: (b, 0, 0)),
        ],
        out_specs=pl.BlockSpec((1, S, pw), lambda b, p: (b, 0, p)),
        compiler_params=_cparams(("parallel", "parallel")),
    )(qkv, qkv, qkv, mask_bias)


# ---------------------------------------------------------------------------
# Fused classifier head (lane-padded 300->384, 100->128; padding is zeroed)
# ---------------------------------------------------------------------------
def _classifier_kernel(x_ref,
                       g1, be1, m1, v1, w1, b1,
                       g2, be2, m2, v2, w2, b2,
                       g3, be3, m3, v3, w3t, b3,
                       o_ref):
    x = x_ref[...].astype(jnp.float32)
    # BatchNorm1d(768) (eval) -> Linear(768,300) -> ReLU      (padded to 384 cols)
    x = (x - m1[...]) * jax.lax.rsqrt(v1[...] + BN_EPS) * g1[...] + be1[...]
    x = jnp.maximum(
        jnp.dot(x.astype(jnp.bfloat16), w1[...], preferred_element_type=jnp.float32)
        + b1[...], 0.0)
    # BatchNorm1d(300) -> Dropout(identity) -> Linear(300,100) -> ReLU   (padded to 128)
    x = (x - m2[...]) * jax.lax.rsqrt(v2[...] + BN_EPS) * g2[...] + be2[...]
    x = jnp.maximum(
        jnp.dot(x.astype(jnp.bfloat16), w2[...], preferred_element_type=jnp.float32)
        + b2[...], 0.0)
    # BatchNorm1d(100) -> Dropout(identity) -> Linear(100,1) -> Sigmoid
    x = (x - m3[...]) * jax.lax.rsqrt(v3[...] + BN_EPS) * g3[...] + be3[...]
    logit = jnp.sum(x * w3t[...], axis=-1, keepdims=True) + b3[...]
    o_ref[...] = 1.0 / (1.0 + jnp.exp(-logit))


def classifier_head(pooled, cp):
    B = pooled.shape[0]
    args = [pooled,
            cp["bn1_g"], cp["bn1_b"], cp["bn1_m"], cp["bn1_v"], cp["w1"], cp["b1"],
            cp["bn2_g"], cp["bn2_b"], cp["bn2_m"], cp["bn2_v"], cp["w2"], cp["b2"],
            cp["bn3_g"], cp["bn3_b"], cp["bn3_m"], cp["bn3_v"], cp["w3t"], cp["b3"]]
    in_specs = [pl.BlockSpec(a.shape, lambda i, nd=a.ndim: (0,) * nd) for a in args]
    return pl.pallas_call(
        _classifier_kernel,
        out_shape=jax.ShapeDtypeStruct((B, 1), jnp.float32),
        grid=(1,),
        in_specs=in_specs,
        out_specs=pl.BlockSpec((B, 1), lambda i: (0, 0)),
        compiler_params=_cparams(("arbitrary",)),
    )(*args)


# ---------------------------------------------------------------------------
# Parameters (deterministic synthetic init; matmul weights in bf16)
# ---------------------------------------------------------------------------
def init_params(seed=0):
    keys = iter(jax.random.split(jax.random.PRNGKey(seed), 256))
    scale = 1.0 / math.sqrt(HEAD_DIM)

    def nrm(shape, std=0.02):
        return (std * jax.random.normal(next(keys), shape)).astype(jnp.float32)

    p = {
        "word_emb": nrm((VOCAB, HIDDEN)),
        "pos_emb": nrm((MAX_POS, HIDDEN)),
        "type_emb": nrm((TYPE_VOCAB, HIDDEN)),
        "emb_ln_g": jnp.ones((1, HIDDEN), jnp.float32),
        "emb_ln_b": jnp.zeros((1, HIDDEN), jnp.float32),
        "pool_w": nrm((HIDDEN, HIDDEN)).astype(jnp.bfloat16),
        "pool_b": jnp.zeros((1, HIDDEN), jnp.float32),
        "layers": [],
    }
    for _ in range(N_LAYERS):
        # fused Q|K|V projection; 1/sqrt(head_dim) folded into the Q columns
        wqkv = nrm((HIDDEN, 3 * HIDDEN)).at[:, :HIDDEN].multiply(scale)
        bqkv = jnp.zeros((1, 3 * HIDDEN), jnp.float32).at[:, :HIDDEN].multiply(scale)
        p["layers"].append({
            "wqkv": wqkv.astype(jnp.bfloat16),
            "bqkv": bqkv,
            "wo": nrm((HIDDEN, HIDDEN)).astype(jnp.bfloat16),
            "bo": jnp.zeros((1, HIDDEN), jnp.float32),
            "ln1_g": jnp.ones((1, HIDDEN), jnp.float32),
            "ln1_b": jnp.zeros((1, HIDDEN), jnp.float32),
            "wi": nrm((HIDDEN, INTERMEDIATE)).astype(jnp.bfloat16),
            "bi": jnp.zeros((1, INTERMEDIATE), jnp.float32),
            "wo2": nrm((INTERMEDIATE, HIDDEN)).astype(jnp.bfloat16),
            "bo2": jnp.zeros((1, HIDDEN), jnp.float32),
            "ln2_g": jnp.ones((1, HIDDEN), jnp.float32),
            "ln2_b": jnp.zeros((1, HIDDEN), jnp.float32),
        })

    # Classifier head, zero-padded to lane multiples: 300 -> 384, 100 -> 128.
    w1 = jnp.pad(nrm((HIDDEN, C1)), ((0, 0), (0, C1P - C1))).astype(jnp.bfloat16)
    w2 = jnp.pad(nrm((C1, C2)), ((0, C1P - C1), (0, C2P - C2))).astype(jnp.bfloat16)
    w3t = jnp.pad(nrm((1, C2)), ((0, 0), (0, C2P - C2)))  # tiny; kept f32 (VPU reduce)
    p["classifier"] = {
        "bn1_g": jnp.ones((1, HIDDEN), jnp.float32), "bn1_b": jnp.zeros((1, HIDDEN), jnp.float32),
        "bn1_m": jnp.zeros((1, HIDDEN), jnp.float32), "bn1_v": jnp.ones((1, HIDDEN), jnp.float32),
        "w1": w1, "b1": jnp.zeros((1, C1P), jnp.float32),
        "bn2_g": jnp.pad(jnp.ones((1, C1), jnp.float32), ((0, 0), (0, C1P - C1))),
        "bn2_b": jnp.zeros((1, C1P), jnp.float32),
        "bn2_m": jnp.zeros((1, C1P), jnp.float32),
        "bn2_v": jnp.pad(jnp.ones((1, C1), jnp.float32), ((0, 0), (0, C1P - C1)),
                         constant_values=1.0),
        "w2": w2, "b2": jnp.zeros((1, C2P), jnp.float32),
        "bn3_g": jnp.pad(jnp.ones((1, C2), jnp.float32), ((0, 0), (0, C2P - C2))),
        "bn3_b": jnp.zeros((1, C2P), jnp.float32),
        "bn3_m": jnp.zeros((1, C2P), jnp.float32),
        "bn3_v": jnp.pad(jnp.ones((1, C2), jnp.float32), ((0, 0), (0, C2P - C2)),
                         constant_values=1.0),
        "w3t": w3t,  # Linear(100,1) weight stored as [1,128] for mul+reduce
        "b3": jnp.zeros((1, 1), jnp.float32),
    }
    return p


# ---------------------------------------------------------------------------
# Forward pass (gathers/reshapes in JAX glue, hot paths in Pallas)
# ---------------------------------------------------------------------------
def bert_class_forward(params, ids, mask, token_type_ids):
    B, S = ids.shape
    M = B * S

    # Embedding gathers (XLA glue); 3-way sum + LayerNorm fused in one kernel,
    # with the [S, H] position table fed via index_map (no broadcast slab in HBM).
    we = params["word_emb"][ids].reshape(M, HIDDEN)
    te = params["type_emb"][token_type_ids].reshape(M, HIDDEN)
    pe = params["pos_emb"][:S]
    x = embed_layernorm(we, te, pe, params["emb_ln_g"], params["emb_ln_b"], B, S)

    # Additive attention-mask bias: (1 - mask) * -1e4, shape [B, 1, S].
    mask_bias = ((1.0 - mask.astype(jnp.float32)) * -1e4)[:, None, :]

    for lyr in params["layers"]:
        qkv = linear(x, lyr["wqkv"], lyr["bqkv"])                      # [M, 3H] bf16
        ctx = attention(qkv.reshape(B, S, 3 * HIDDEN), mask_bias)      # [B, S, H] bf16
        # Output projection + residual + LayerNorm, fused.
        x = linear_residual_layernorm(ctx.reshape(M, HIDDEN), lyr["wo"], lyr["bo"],
                                      x, lyr["ln1_g"], lyr["ln1_b"])
        h = linear(x, lyr["wi"], lyr["bi"], act="gelu")                # [M, 3072] bf16
        x = linear_residual_layernorm(h, lyr["wo2"], lyr["bo2"],
                                      x, lyr["ln2_g"], lyr["ln2_b"])

    # BERT pooler: tanh(Linear) on the [CLS] (first) token.
    cls = x.reshape(B, S, HIDDEN)[:, 0, :]
    pooled = linear(cls, params["pool_w"], params["pool_b"], act="tanh")

    # Fused classifier head: BN->Linear->ReLU->BN->Linear->ReLU->BN->Linear->Sigmoid.
    return classifier_head(pooled, params["classifier"])


if __name__ == "__main__":
    B, S = 2, 8
    key = jax.random.PRNGKey(0)
    k_ids, _ = jax.random.split(key)
    ids = jax.random.randint(k_ids, (B, S), 0, VOCAB, dtype=jnp.int32)
    token_type_ids = jnp.zeros((B, S), jnp.int32)
    # Second example has 2 padding positions to exercise the attention mask.
    mask = (jnp.arange(S)[None, :] < jnp.array([[S], [S - 2]])).astype(jnp.int32)

    params = init_params(0)
    out = bert_class_forward(params, ids, mask, token_type_ids)
    out = jax.block_until_ready(out)

    assert out.shape == (B, 1), out.shape
    assert bool(jnp.all((out >= 0.0) & (out <= 1.0)))
    print("KERNEL_OK")
</pallas_src>

<mosaic_0001>
module attributes {stable_mosaic.version = 11 : i64} {
  func.func @_embed_ln_kernel(%arg0: i32, %arg1: memref<8x768xf32, #tpu.memory_space<vmem>>, %arg2: memref<8x768xf32, #tpu.memory_space<vmem>>, %arg3: memref<8x768xf32, #tpu.memory_space<vmem>>, %arg4: memref<1x768xf32, #tpu.memory_space<vmem>>, %arg5: memref<1x768xf32, #tpu.memory_space<vmem>>, %arg6: memref<8x768xbf16, #tpu.memory_space<vmem>>) attributes {dimension_semantics = [#tpu.dimension_semantics<parallel>], iteration_bounds = array<i64: 2>, scalar_prefetch = 0 : i64, scratch_operands = 0 : i64, tpu.core_type = #tpu.core_type<tc>, window_params = [{transform_indices = @transform_0, window_bounds = array<i64: 8, 768>}, {transform_indices = @transform_1, window_bounds = array<i64: 8, 768>}, {pipeline_mode = #tpu.pipeline_mode<synchronous>, transform_indices = @transform_2, window_bounds = array<i64: 8, 768>}, {pipeline_mode = #tpu.pipeline_mode<synchronous>, transform_indices = @transform_3, window_bounds = array<i64: 1, 768>}, {pipeline_mode = #tpu.pipeline_mode<synchronous>, transform_indices = @transform_4, window_bounds = array<i64: 1, 768>}, {transform_indices = @transform_5, window_bounds = array<i64: 8, 768>}]} {
    %c0 = arith.constant 0 : index
    %c0_0 = arith.constant 0 : index
    %0 = vector.load %arg1[%c0, %c0_0] : memref<8x768xf32, #tpu.memory_space<vmem>>, vector<8x768xf32>
    %c0_1 = arith.constant 0 : index
    %c0_2 = arith.constant 0 : index
    %1 = vector.load %arg2[%c0_1, %c0_2] : memref<8x768xf32, #tpu.memory_space<vmem>>, vector<8x768xf32>
    %2 = arith.addf %0, %1 : vector<8x768xf32>
    %c0_3 = arith.constant 0 : index
    %c0_4 = arith.constant 0 : index
    %3 = vector.load %arg3[%c0_3, %c0_4] : memref<8x768xf32, #tpu.memory_space<vmem>>, vector<8x768xf32>
    %4 = arith.addf %2, %3 : vector<8x768xf32>
    %cst = arith.constant dense<0.000000e+00> : vector<8xf32>
    %5 = vector.multi_reduction <add>, %4, %cst [1] : vector<8x768xf32> to vector<8xf32>
    %6 = vector.shape_cast %5 : vector<8xf32> to vector<8x1xf32>
    %cst_5 = arith.constant 7.680000e+02 : f32
    %7 = vector.broadcast %cst_5 : f32 to vector<8x1xf32>
    %8 = arith.divf %6, %7 : vector<8x1xf32>
    %9 = vector.broadcast %8 : vector<8x1xf32> to vector<8x768xf32>
    %10 = arith.subf %4, %9 : vector<8x768xf32>
    %11 = arith.mulf %10, %10 : vector<8x768xf32>
    %cst_6 = arith.constant dense<0.000000e+00> : vector<8xf32>
    %12 = vector.multi_reduction <add>, %11, %cst_6 [1] : vector<8x768xf32> to vector<8xf32>
    %13 = vector.shape_cast %12 : vector<8xf32> to vector<8x1xf32>
    %cst_7 = arith.constant 7.680000e+02 : f32
    %14 = vector.broadcast %cst_7 : f32 to vector<8x1xf32>
    %15 = arith.divf %13, %14 : vector<8x1xf32>
    %16 = vector.broadcast %8 : vector<8x1xf32> to vector<8x768xf32>
    %17 = arith.subf %4, %16 : vector<8x768xf32>
    %cst_8 = arith.constant 9.99999996E-13 : f32
    %18 = vector.broadcast %cst_8 : f32 to vector<8x1xf32>
    %19 = arith.addf %15, %18 : vector<8x1xf32>
    %20 = math.rsqrt %19 : vector<8x1xf32>
    %21 = vector.broadcast %20 : vector<8x1xf32> to vector<8x768xf32>
    %22 = arith.mulf %17, %21 : vector<8x768xf32>
    %c0_9 = arith.constant 0 : index
    %c0_10 = arith.constant 0 : index
    %23 = vector.load %arg4[%c0_9, %c0_10] : memref<1x768xf32, #tpu.memory_space<vmem>>, vector<1x768xf32>
    %24 = vector.broadcast %23 : vector<1x768xf32> to vector<8x768xf32>
    %25 = arith.mulf %22, %24 : vector<8x768xf32>
    %c0_11 = arith.constant 0 : index
    %c0_12 = arith.constant 0 : index
    %26 = vector.load %arg5[%c0_11, %c0_12] : memref<1x768xf32, #tpu.memory_space<vmem>>, vector<1x768xf32>
    %27 = vector.broadcast %26 : vector<1x768xf32> to vector<8x768xf32>
    %28 = arith.addf %25, %27 : vector<8x768xf32>
    %29 = arith.truncf %28 : vector<8x768xf32> to vector<8x768xbf16>
    %c0_13 = arith.constant 0 : index
    %c0_14 = arith.constant 0 : index
    %30 = vector.load %arg6[%c0_13, %c0_14] : memref<8x768xbf16, #tpu.memory_space<vmem>>, vector<8x768xbf16>
    tpu.vector_store %arg6[%c0_13, %c0_14], %29 {strides = array<i32>} : memref<8x768xbf16, #tpu.memory_space<vmem>>, vector<8x768xbf16>,
    return
  }
  func.func @transform_0(%arg0: i32) -> (i32, i32) {
    %c0_i32 = arith.constant 0 : i32
    %c0_i32_0 = arith.constant 0 : i32
    return %arg0, %c0_i32 : i32, i32
  }
  func.func @transform_1(%arg0: i32) -> (i32, i32) {
    %c0_i32 = arith.constant 0 : i32
    %c0_i32_0 = arith.constant 0 : i32
    return %arg0, %c0_i32 : i32, i32
  }
  func.func @transform_2(%arg0: i32) -> (i32, i32) {
    %c0_i32 = arith.constant 0 : i32
    %c0_i32_0 = arith.constant 0 : i32
    %c0_i32_1 = arith.constant 0 : i32
    return %c0_i32, %c0_i32_0 : i32, i32
  }
  func.func @transform_3(%arg0: i32) -> (i32, i32) {
    %c0_i32 = arith.constant 0 : i32
    %c0_i32_0 = arith.constant 0 : i32
    %c0_i32_1 = arith.constant 0 : i32
    return %c0_i32, %c0_i32_0 : i32, i32
  }
  func.func @transform_4(%arg0: i32) -> (i32, i32) {
    %c0_i32 = arith.constant 0 : i32
    %c0_i32_0 = arith.constant 0 : i32
    %c0_i32_1 = arith.constant 0 : i32
    return %c0_i32, %c0_i32_0 : i32, i32
  }
  func.func @transform_5(%arg0: i32) -> (i32, i32) {
    %c0_i32 = arith.constant 0 : i32
    %c0_i32_0 = arith.constant 0 : i32
    return %arg0, %c0_i32 : i32, i32
  }
}

</mosaic_0001>

<llo_original>
// kernel: tpu_custom_call.1
$region0: #{tpu_custom_call.1}
  #allocation0 [shape = 'u32[]', space=smem, size = 0x4, offset = 0x4, fixed_abs, tag = 'smem constant byte address 0x4 - core index']
  #allocation1 [shape = 'u32[144,128]{1,0:T(1,128)}', space=vmem, size = 0x12000, scoped, tag = 'internal scratch']
  %s0 = inlined_call_operand.hbm [shape: f32[16,768], index: 0, kind: input, shape index: {}]
  %s1 = inlined_call_operand.hbm [shape: f32[16,768], index: 1, kind: input, shape index: {}]
  %s2 = inlined_call_operand.hbm [shape: f32[8,768], index: 2, kind: input, shape index: {}]
  %s3 = inlined_call_operand.vmem [shape: f32[1,768], index: 3, kind: input, shape index: {}]
  %s4 = inlined_call_operand.vmem [shape: f32[1,768], index: 4, kind: input, shape index: {}]
  %s5 = inlined_call_operand.hbm [shape: bf16[16,768], index: 5, kind: output, shape index: {}]
  %s6 = sld [smem:[#allocation0]]
  $region65: #{tpu_custom_call.1} parent=0
    _
  %s8 = ssub.s32 1, %s6
  %s9 = scalar_select 0, %s8, %s6
  $region1: #{tpu_custom_call.1} parent=0
    #allocation2 [shape = 'u8[49152]{0}', space=vmem, size = 0xc000, scoped, tag = 'input window, operand 0']
    #allocation3 [shape = 's32[2]{0}', space=sflag, size = 0x8, scoped, tag = 'scoped memory for tpu_custom_call.1']
    #allocation4 [shape = 's32[2]{0}', space=sflag, size = 0x8, scoped, tag = 'scoped memory for tpu_custom_call.1']
    #allocation5 [shape = 'u8[49152]{0}', space=vmem, size = 0xc000, scoped, tag = 'input window, operand 1']
    #allocation6 [shape = 's32[2]{0}', space=sflag, size = 0x8, scoped, tag = 'scoped memory for tpu_custom_call.1']
    #allocation7 [shape = 'u8[24576]{0}', space=vmem, size = 0x6000, scoped, tag = 'input window, operand 2, single buffered']
    #allocation8 [shape = 'u8[24576]{0}', space=vmem, size = 0x6000, scoped, tag = 'output window, operand 0']
    %10 = vsyncpa [#allocation3], 0
    %s11 = scalar_lea.sflag [#allocation3], 1
    %12 = vsyncpa %s11, 0
    %13 = vsyncpa [#allocation6], 0
    %s14 = scalar_lea.sflag [#allocation6], 1
    %15 = vsyncpa %s14, 0
    %16 = vsyncpa [#allocation4], 0
    %s17 = scalar_lea.sflag [#allocation4], 1
    %18 = vsyncpa %s17, 0
    loop: start=0, step=1, limit=4
    $region2: #{tpu_custom_call.1} parent=1 // loop_pre_header
      _
    $region3: #{tpu_custom_call.1} parent=1 // loop_header
      %s20 = sphi 0, %s24
      %p21 = scmp.ge.s32.totalorder %s20, 4
      %s30 = sphi 0, %s32
      %s33 = sphi 0, %s30
      %s34 = sphi 0, %s33
      %s50 = sphi 0, %s34
      %s56 = sphi 0, %s58
      %s59 = sphi 0, %s56
      %s60 = sphi 0, %s59
      %s76 = sphi 0, %s60
      %s80 = sphi 0, %s80
      %s82 = sphi 0, %s80
      %s83 = sphi 0, %s82
      %s97 = sphi 0, %s83
      %s101 = sphi 0, %s101
      %s103 = sphi 0, %s101
      %s104 = sphi 0, %s103
      %s118 = sphi 0, %s104
      %s122 = sphi 0, %s122
      %s124 = sphi 0, %s122
      %s125 = sphi 0, %s124
      %s139 = sphi 0, %s125
      %s145 = sphi 0, %s147
      %s148 = sphi 0, %s145
      %s149 = sphi 0, %s148
      %s165 = sphi 0, %s149
    $region4: #{tpu_custom_call.1} parent=1 // loop_header_branch
      %23 = sbr.rel (%p21) target = $region8
    $region5: #{tpu_custom_call.1} parent=1 // loop_body
      %s25 = ssub.s32 %s20, 1
      %s26 = ssub.s32 %s20, 2
      %s27 = sadd.s32 %s20, 1
      %s28 = ssub.s32 %s20, %s27
      %p29 = scmp.eq.s32.totalorder %s28, 0
      %s31 = sadd.s32 %s30, 1
      %s32 = scalar_select %p29, %s30, %s31
      %p35 = pneg %p29
      %p36 = scmp.eq.s32.totalorder %s20, 1
      %p37 = por %p35, %p36
      %p38 = scmp.ne.s32.totalorder %s30, %s33
      %p39 = scmp.eq.s32.totalorder %s20, 0
      %p40 = por %p38, %p39
      %p41 = scmp.ne.s32.totalorder %s30, %s33
      %p42 = scmp.eq.s32.totalorder %s25, 1
      %p43 = por %p41, %p42
      %p44 = scmp.ne.s32.totalorder %s33, %s34
      %p45 = scmp.eq.s32.totalorder %s25, 0
      %p46 = por %p44, %p45
      %p47 = scmp.ne.s32.totalorder %s33, %s34
      %p48 = scmp.eq.s32.totalorder %s26, 1
      %p49 = por %p47, %p48
      %p51 = scmp.ne.s32.totalorder %s34, %s50
      %p52 = scmp.eq.s32.totalorder %s26, 0
      %p53 = por %p51, %p52
      %s54 = ssub.s32 %s20, %s27
      %p55 = scmp.eq.s32.totalorder %s54, 0
      %s57 = sadd.s32 %s56, 1
      %s58 = scalar_select %p55, %s56, %s57
      %p61 = pneg %p55
      %p62 = scmp.eq.s32.totalorder %s20, 1
      %p63 = por %p61, %p62
      %p64 = scmp.ne.s32.totalorder %s56, %s59
      %p65 = scmp.eq.s32.totalorder %s20, 0
      %p66 = por %p64, %p65
      %p67 = scmp.ne.s32.totalorder %s56, %s59
      %p68 = scmp.eq.s32.totalorder %s25, 1
      %p69 = por %p67, %p68
      %p70 = scmp.ne.s32.totalorder %s59, %s60
      %p71 = scmp.eq.s32.totalorder %s25, 0
      %p72 = por %p70, %p71
      %p73 = scmp.ne.s32.totalorder %s59, %s60
      %p74 = scmp.eq.s32.totalorder %s26, 1
      %p75 = por %p73, %p74
      %p77 = scmp.ne.s32.totalorder %s60, %s76
      %p78 = scmp.eq.s32.totalorder %s26, 0
      %p79 = por %p77, %p78
      %s81 = sadd.s32 %s80, 1
      %p84 = scmp.eq.s32.totalorder %s20, 1
      %p85 = scmp.ne.s32.totalorder %s80, %s82
      %p86 = scmp.eq.s32.totalorder %s20, 0
      %p87 = por %p85, %p86
      %p88 = scmp.ne.s32.totalorder %s80, %s82
      %p89 = scmp.eq.s32.totalorder %s25, 1
      %p90 = por %p88, %p89
      %p91 = scmp.ne.s32.totalorder %s82, %s83
      %p92 = scmp.eq.s32.totalorder %s25, 0
      %p93 = por %p91, %p92
      %p94 = scmp.ne.s32.totalorder %s82, %s83
      %p95 = scmp.eq.s32.totalorder %s26, 1
      %p96 = por %p94, %p95
      %p98 = scmp.ne.s32.totalorder %s83, %s97
      %p99 = scmp.eq.s32.totalorder %s26, 0
      %p100 = por %p98, %p99
      %s102 = sadd.s32 %s101, 1
      %p105 = scmp.eq.s32.totalorder %s20, 1
      %p106 = scmp.ne.s32.totalorder %s101, %s103
      %p107 = scmp.eq.s32.totalorder %s20, 0
      %p108 = por %p106, %p107
      %p109 = scmp.ne.s32.totalorder %s101, %s103
      %p110 = scmp.eq.s32.totalorder %s25, 1
      %p111 = por %p109, %p110
      %p112 = scmp.ne.s32.totalorder %s103, %s104
      %p113 = scmp.eq.s32.totalorder %s25, 0
      %p114 = por %p112, %p113
      %p115 = scmp.ne.s32.totalorder %s103, %s104
      %p116 = scmp.eq.s32.totalorder %s26, 1
      %p117 = por %p115, %p116
      %p119 = scmp.ne.s32.totalorder %s104, %s118
      %p120 = scmp.eq.s32.totalorder %s26, 0
      %p121 = por %p119, %p120
      %s123 = sadd.s32 %s122, 1
      %p126 = scmp.eq.s32.totalorder %s20, 1
      %p127 = scmp.ne.s32.totalorder %s122, %s124
      %p128 = scmp.eq.s32.totalorder %s20, 0
      %p129 = por %p127, %p128
      %p130 = scmp.ne.s32.totalorder %s122, %s124
      %p131 = scmp.eq.s32.totalorder %s25, 1
      %p132 = por %p130, %p131
      %p133 = scmp.ne.s32.totalorder %s124, %s125
      %p134 = scmp.eq.s32.totalorder %s25, 0
      %p135 = por %p133, %p134
      %p136 = scmp.ne.s32.totalorder %s124, %s125
      %p137 = scmp.eq.s32.totalorder %s26, 1
      %p138 = por %p136, %p137
      %p140 = scmp.ne.s32.totalorder %s125, %s139
      %p141 = scmp.eq.s32.totalorder %s26, 0
      %p142 = por %p140, %p141
      %s143 = ssub.s32 %s20, %s27
      %p144 = scmp.eq.s32.totalorder %s143, 0
      %s146 = sadd.s32 %s145, 1
      %s147 = scalar_select %p144, %s145, %s146
      %p150 = pneg %p144
      %p151 = scmp.eq.s32.totalorder %s20, 1
      %p152 = por %p150, %p151
      %p153 = scmp.ne.s32.totalorder %s145, %s148
      %p154 = scmp.eq.s32.totalorder %s20, 0
      %p155 = por %p153, %p154
      %p156 = scmp.ne.s32.totalorder %s145, %s148
      %p157 = scmp.eq.s32.totalorder %s25, 1
      %p158 = por %p156, %p157
      %p159 = scmp.ne.s32.totalorder %s148, %s149
      %p160 = scmp.eq.s32.totalorder %s25, 0
      %p161 = por %p159, %p160
      %p162 = scmp.ne.s32.totalorder %s148, %s149
      %p163 = scmp.eq.s32.totalorder %s26, 1
      %p164 = por %p162, %p163
      %p166 = scmp.ne.s32.totalorder %s149, %s165
      %p167 = scmp.eq.s32.totalorder %s26, 0
      %p168 = por %p166, %p167
      %p169 = scmp.le.s32.totalorder 1, %s20
      %p170 = scmp.lt.s32.totalorder %s20, 3
      %p171 = pnand %p169, %p170
      %p172 = pneg %p171
      // Predicated region
      $region9: #{tpu_custom_call.1} parent=5 // pred_check
        _
      $region10: #{tpu_custom_call.1} parent=5 // pred_check_branch
        %174 = sbr.rel (%p171) target = $region12
      $region11: #{tpu_custom_call.1} parent=5 // pred_region
        %s175 = ssub.s32 %s20, 1
        // Predicated region
        $region13: #{tpu_custom_call.1} parent=11 // pred_check
          %p176 = pneg %p93
        $region14: #{tpu_custom_call.1} parent=11 // pred_check_branch
          %178 = sbr.rel (%p176) target = $region16
        $region15: #{tpu_custom_call.1} parent=11 // pred_region
          %s180 = ssub.s32 768, 768
          %181 = vsyncadd [#allocation6], %s180
          %s183 = sshll.u32 [#allocation7], 4
          %s184 = int_to_ptr.vmem [resolvable:$true] %s183
          %186 = dma.hbm_to_vmem [thread:$0]  %s2, 768, %s184, [#allocation6]
        $region16: #{tpu_custom_call.1} parent=11 // pred_fallthru
          _
        // Predicated region
        $region17: #{tpu_custom_call.1} parent=11 // pred_check
          %p187 = pneg %p114
        $region18: #{tpu_custom_call.1} parent=11 // pred_check_branch
          %189 = sbr.rel (%p187) target = $region20
        $region19: #{tpu_custom_call.1} parent=11 // pred_region
          _
        $region20: #{tpu_custom_call.1} parent=11 // pred_fallthru
          _
        // Predicated region
        $region21: #{tpu_custom_call.1} parent=11 // pred_check
          %p190 = pneg %p135
        $region22: #{tpu_custom_call.1} parent=11 // pred_check_branch
          %192 = sbr.rel (%p190) target = $region24
        $region23: #{tpu_custom_call.1} parent=11 // pred_region
          _
        $region24: #{tpu_custom_call.1} parent=11 // pred_fallthru
          _
      $region12: #{tpu_custom_call.1} parent=5 // pred_fallthru
        _
      %p193 = scmp.lt.s32.totalorder %s20, 2
      // Predicated region
      $region25: #{tpu_custom_call.1} parent=5 // pred_check
        %p194 = pneg %p193
      $region26: #{tpu_custom_call.1} parent=5 // pred_check_branch
        %196 = sbr.rel (%p194) target = $region28
      $region27: #{tpu_custom_call.1} parent=5 // pred_region
        // Predicated region
        $region29: #{tpu_custom_call.1} parent=27 // pred_check
          %p197 = pneg %p40
        $region30: #{tpu_custom_call.1} parent=27 // pred_check_branch
          %199 = sbr.rel (%p197) target = $region32
        $region31: #{tpu_custom_call.1} parent=27 // pred_region
          %s200 = sand.u32 %s30, 1
          %s201 = scalar_lea.sflag [#allocation3], %s200
          %s202 = sand.u32 %s30, 1
          %s203 = smul.addr %s202, 48
          %s204 = scalar_lea.vmem [#allocation2], %s203
          %s206 = ssub.s32 768, 768
          %207 = vsyncadd %s201, %s206
          %s208 = smul.addr %s20, 6
          %s209 = smul.addr %s208, 128
          %s210 = scalar_lea.hbm %s0, %s209
          %s212 = sshll.u32 %s204, 4
          %s213 = int_to_ptr.vmem [resolvable:$true] %s212
          %215 = dma.hbm_to_vmem [thread:$0]  %s210, 768, %s213, %s201
        $region32: #{tpu_custom_call.1} parent=27 // pred_fallthru
          _
        // Predicated region
        $region33: #{tpu_custom_call.1} parent=27 // pred_check
          %p216 = pneg %p66
        $region34: #{tpu_custom_call.1} parent=27 // pred_check_branch
          %218 = sbr.rel (%p216) target = $region36
        $region35: #{tpu_custom_call.1} parent=27 // pred_region
          %s219 = sand.u32 %s20, 1
          %s220 = scalar_lea.sflag [#allocation6], %s219
          %s221 = sand.u32 %s56, 1
          %s222 = smul.addr %s221, 48
          %s223 = scalar_lea.vmem [#allocation5], %s222
          %s225 = ssub.s32 768, 768
          %226 = vsyncadd %s220, %s225
          %s227 = smul.addr %s20, 6
          %s228 = smul.addr %s227, 128
          %s229 = scalar_lea.hbm %s1, %s228
          %s231 = sshll.u32 %s223, 4
          %s232 = int_to_ptr.vmem [resolvable:$true] %s231
          %234 = dma.hbm_to_vmem [thread:$0]  %s229, 768, %s232, %s220
        $region36: #{tpu_custom_call.1} parent=27 // pred_fallthru
          _
      $region28: #{tpu_custom_call.1} parent=5 // pred_fallthru
        _
      %p235 = scmp.le.s32.totalorder 1, %s20
      %p236 = scmp.lt.s32.totalorder %s20, 3
      %p237 = pnand %p235, %p236
      %p238 = pneg %p237
      // Predicated region
      $region37: #{tpu_custom_call.1} parent=5 // pred_check
        _
      $region38: #{tpu_custom_call.1} parent=5 // pred_check_branch
        %240 = sbr.rel (%p237) target = $region40
      $region39: #{tpu_custom_call.1} parent=5 // pred_region
        %s241 = ssub.s32 %s20, 1
        %s242 = sand.u32 %s33, 1
        %s243 = scalar_lea.sflag [#allocation3], %s242
        %s244 = sand.u32 %s33, 1
        %s245 = smul.addr %s244, 48
        %s246 = scalar_lea.vmem [#allocation2], %s245
        // Predicated region
        $region41: #{tpu_custom_call.1} parent=39 // pred_check
          %p247 = pneg %p46
        $region42: #{tpu_custom_call.1} parent=39 // pred_check_branch
          %249 = sbr.rel (%p247) target = $region44
        $region43: #{tpu_custom_call.1} parent=39 // pred_region
          %250 = dma.done %s243, 768
        $region44: #{tpu_custom_call.1} parent=39 // pred_fallthru
          _
        %s251 = sand.u32 %s25, 1
        %s252 = scalar_lea.sflag [#allocation6], %s251
        %s253 = sand.u32 %s59, 1
        %s254 = smul.addr %s253, 48
        %s255 = scalar_lea.vmem [#allocation5], %s254
        // Predicated region
        $region45: #{tpu_custom_call.1} parent=39 // pred_check
          %p256 = pneg %p72
        $region46: #{tpu_custom_call.1} parent=39 // pred_check_branch
          %258 = sbr.rel (%p256) target = $region48
        $region47: #{tpu_custom_call.1} parent=39 // pred_region
          %259 = dma.done %s252, 768
        $region48: #{tpu_custom_call.1} parent=39 // pred_fallthru
          _
        // Predicated region
        $region49: #{tpu_custom_call.1} parent=39 // pred_check
          %p260 = pneg %p93
        $region50: #{tpu_custom_call.1} parent=39 // pred_check_branch
          %262 = sbr.rel (%p260) target = $region52
        $region51: #{tpu_custom_call.1} parent=39 // pred_region
          %263 = dma.done [#allocation6], 768
        $region52: #{tpu_custom_call.1} parent=39 // pred_fallthru
          _
        %s264 = sand.u32 %s33, 1
        %s265 = scalar_lea.sflag [#allocation3], %s264
        %s266 = sand.u32 %s33, 1
        %s267 = smul.addr %s266, 48
        %s268 = scalar_lea.vmem [#allocation2], %s267
        %p269 = pneg %p46
        %p270 = pneg %p43
        %s271 = sand.u32 %s25, 1
        %s272 = scalar_lea.sflag [#allocation6], %s271
        %s273 = sand.u32 %s59, 1
        %s274 = smul.addr %s273, 48
        %s275 = scalar_lea.vmem [#allocation5], %s274
        %p276 = pneg %p72
        %p277 = pneg %p69
        %p278 = pneg %p93
        %p279 = pneg %p90
        %p280 = pneg %p114
        %p281 = pneg %p111
        %p282 = pneg %p135
        %p283 = pneg %p132
        %p284 = pneg %p161
        %p285 = pneg %p158
        %s286 = sand.u32 %s148, 1
        %s287 = scalar_lea.sflag [#allocation4], %s286
        %s288 = sand.u32 %s148, 1
        %s289 = smul.addr %s288, 24
        %s290 = scalar_lea.vmem [#allocation8], %s289
        %v291 = vld [vmem:[%s246] sm:$0xff]
        %v292 = vld [vmem:[%s246 + $0x8] sm:$0xff]
        %v293 = vld [vmem:[%s246 + $0x10] sm:$0xff]
        %v294 = vld [vmem:[%s246 + $0x18] sm:$0xff]
        %v295 = vld [vmem:[%s246 + $0x20] sm:$0xff]
        %v296 = vld [vmem:[%s246 + $0x28] sm:$0xff]
        %v297 = vld [vmem:[%s255] sm:$0xff]
        %v298 = vld [vmem:[%s255 + $0x8] sm:$0xff]
        %v299 = vld [vmem:[%s255 + $0x10] sm:$0xff]
        %v300 = vld [vmem:[%s255 + $0x18] sm:$0xff]
        %v301 = vld [vmem:[%s255 + $0x20] sm:$0xff]
        %v302 = vld [vmem:[%s255 + $0x28] sm:$0xff]
        %v303 = vadd.f32 %v291, %v297
        %v304 = vadd.f32 %v292, %v298
        %v305 = vadd.f32 %v293, %v299
        %v306 = vadd.f32 %v294, %v300
        %v307 = vadd.f32 %v295, %v301
        %v308 = vadd.f32 %v296, %v302
        %v309 = vld [vmem:[#allocation7] sm:$0xff]
        %v310 = vld [vmem:[#allocation7 + $0x8] sm:$0xff]
        %v311 = vld [vmem:[#allocation7 + $0x10] sm:$0xff]
        %v312 = vld [vmem:[#allocation7 + $0x18] sm:$0xff]
        %v313 = vld [vmem:[#allocation7 + $0x20] sm:$0xff]
        %v314 = vld [vmem:[#allocation7 + $0x28] sm:$0xff]
        %v315 = vadd.f32 %v303, %v309
        %v316 = vadd.f32 %v304, %v310
        %v317 = vadd.f32 %v305, %v311
        %v318 = vadd.f32 %v306, %v312
        %v319 = vadd.f32 %v307, %v313
        %v320 = vadd.f32 %v308, %v314
        %v321 = vadd.f32 %v315, %v316
        %v322 = vadd.f32 %v321, %v317
        %v323 = vadd.f32 %v322, %v318
        %v324 = vadd.f32 %v323, %v319
        %v325 = vadd.f32 %v324, %v320
        %326 = vadd.xlane.f32.xlu0 %v325
        %v327 = vpop.xlane.xlu0 %326
        %v328 = vrcp.pop 768.0
        %v329 = vmul.f32 %v327, %v328
        %v330 = vsub.f32 %v315, %v329
        %v331 = vsub.f32 %v316, %v329
        %v332 = vsub.f32 %v317, %v329
        %v333 = vsub.f32 %v318, %v329
        %v334 = vsub.f32 %v319, %v329
        %v335 = vsub.f32 %v320, %v329
        %v336 = vmul.f32 %v330, %v330
        %v337 = vmul.f32 %v331, %v331
        %v338 = vmul.f32 %v332, %v332
        %v339 = vmul.f32 %v333, %v333
        %v340 = vmul.f32 %v334, %v334
        %v341 = vmul.f32 %v335, %v335
        %v342 = vadd.f32 %v336, %v337
        %v343 = vadd.f32 %v342, %v338
        %v344 = vadd.f32 %v343, %v339
        %v345 = vadd.f32 %v344, %v340
        %v346 = vadd.f32 %v345, %v341
        %347 = vadd.xlane.f32.xlu0 %v346
        %v348 = vpop.xlane.xlu0 %347
        %v349 = vmul.f32 %v348, %v328
        %v350 = vadd.f32 %v349, 1e-12
        %v351 = vrsqrt.pop %v350
        %v352 = vmul.f32 %v330, %v351
        %v353 = vmul.f32 %v331, %v351
        %v354 = vmul.f32 %v332, %v351
        %v355 = vmul.f32 %v333, %v351
        %v356 = vmul.f32 %v334, %v351
        %v357 = vmul.f32 %v335, %v351
        %v358 = vld [vmem:[%s3] sm:$0x3f]
        %v360 = vlaneseq
        %v361 = vshrl.u32 %v360, 7
        %v362 = vsub.s32 0, %v361
        %v363 = vrot.slane %v358, %v362
        %v364 = vlaneseq
        %v365 = vshrl.u32 %v364, 7
        %v366 = vsub.s32 1, %v365
        %v367 = vrot.slane %v358, %v366
        %v368 = vlaneseq
        %v369 = vshrl.u32 %v368, 7
        %v370 = vsub.s32 2, %v369
        %v371 = vrot.slane %v358, %v370
        %v372 = vlaneseq
        %v373 = vshrl.u32 %v372, 7
        %v374 = vsub.s32 3, %v373
        %v375 = vrot.slane %v358, %v374
        %v376 = vlaneseq
        %v377 = vshrl.u32 %v376, 7
        %v378 = vsub.s32 4, %v377
        %v379 = vrot.slane %v358, %v378
        %v380 = vlaneseq
        %v381 = vshrl.u32 %v380, 7
        %v382 = vsub.s32 5, %v381
        %v383 = vrot.slane %v358, %v382
        %v390 = vmul.f32 %v352, %v363
        %v391 = vmul.f32 %v353, %v367
        %v392 = vmul.f32 %v354, %v371
        %v393 = vmul.f32 %v355, %v375
        %v394 = vmul.f32 %v356, %v379
        %v395 = vmul.f32 %v357, %v383
        %v396 = vld [vmem:[%s4] sm:$0x3f]
        %v398 = vlaneseq
        %v399 = vshrl.u32 %v398, 7
        %v400 = vsub.s32 0, %v399
        %v401 = vrot.slane %v396, %v400
        %v402 = vlaneseq
        %v403 = vshrl.u32 %v402, 7
        %v404 = vsub.s32 1, %v403
        %v405 = vrot.slane %v396, %v404
        %v406 = vlaneseq
        %v407 = vshrl.u32 %v406, 7
        %v408 = vsub.s32 2, %v407
        %v409 = vrot.slane %v396, %v408
        %v410 = vlaneseq
        %v411 = vshrl.u32 %v410, 7
        %v412 = vsub.s32 3, %v411
        %v413 = vrot.slane %v396, %v412
        %v414 = vlaneseq
        %v415 = vshrl.u32 %v414, 7
        %v416 = vsub.s32 4, %v415
        %v417 = vrot.slane %v396, %v416
        %v418 = vlaneseq
        %v419 = vshrl.u32 %v418, 7
        %v420 = vsub.s32 5, %v419
        %v421 = vrot.slane %v396, %v420
        %v428 = vadd.f32 %v390, %v401
        %v429 = vadd.f32 %v391, %v405
        %v430 = vadd.f32 %v392, %v409
        %v431 = vadd.f32 %v393, %v413
        %v432 = vadd.f32 %v394, %v417
        %v433 = vadd.f32 %v395, %v421
        %v434 = vpack.c.bf16 %v428, %v428
        %v435 = vpack.c.bf16 %v429, %v429
        %v436 = vpack.c.bf16 %v430, %v430
        %v437 = vpack.c.bf16 %v431, %v431
        %v438 = vpack.c.bf16 %v432, %v432
        %v439 = vpack.c.bf16 %v433, %v433
        %v446 = vunpack.c.l.b16 %v434
        %v447 = vunpack.c.l.b16 %v435
        %v448 = vunpack.c.l.b16 %v436
        %v449 = vunpack.c.l.b16 %v437
        %v450 = vunpack.c.l.b16 %v438
        %v451 = vunpack.c.l.b16 %v439
        %v452 = vpack.c.b16 %v447, %v446
        %v453 = vpack.c.b16 %v449, %v448
        %v454 = vpack.c.b16 %v451, %v450
        %458 = vst [vmem:[%s290] sm:$0xff] %v452
        %459 = vst [vmem:[%s290 + $0x8] sm:$0xff] %v453
        %460 = vst [vmem:[%s290 + $0x10] sm:$0xff] %v454
        %s461 = sand.u32 %s148, 1
        %s462 = scalar_lea.sflag [#allocation4], %s461
        %s463 = sand.u32 %s148, 1
        %s464 = smul.addr %s463, 24
        %s465 = scalar_lea.vmem [#allocation8], %s464
        // Predicated region
        $region53: #{tpu_custom_call.1} parent=39 // pred_check
          %p466 = pneg %p158
        $region54: #{tpu_custom_call.1} parent=39 // pred_check_branch
          %468 = sbr.rel (%p466) target = $region56
        $region55: #{tpu_custom_call.1} parent=39 // pred_region
          %s470 = ssub.s32 384, 384
          %471 = vsyncadd %s462, %s470
          %s472 = smul.addr %s25, 6
          %s473 = smul.addr %s472, 64
          %s474 = scalar_lea.hbm %s5, %s473
          %s476 = sshll.u32 %s465, 4
          %s477 = int_to_ptr.vmem [resolvable:$true] %s476
          %479 = dma.vmem_to_hbm [thread:$0]  %s477, 384, %s474, %s462
        $region56: #{tpu_custom_call.1} parent=39 // pred_fallthru
          _
      $region40: #{tpu_custom_call.1} parent=5 // pred_fallthru
        _
      %p480 = scmp.le.s32.totalorder 2, %s20
      // Predicated region
      $region57: #{tpu_custom_call.1} parent=5 // pred_check
        %p481 = pneg %p480
      $region58: #{tpu_custom_call.1} parent=5 // pred_check_branch
        %483 = sbr.rel (%p481) target = $region60
      $region59: #{tpu_custom_call.1} parent=5 // pred_region
        %s484 = ssub.s32 %s20, 2
        // Predicated region
        $region61: #{tpu_custom_call.1} parent=59 // pred_check
          %p485 = pneg %p164
        $region62: #{tpu_custom_call.1} parent=59 // pred_check_branch
          %487 = sbr.rel (%p485) target = $region64
        $region63: #{tpu_custom_call.1} parent=59 // pred_region
          %s488 = sand.u32 %s149, 1
          %s489 = scalar_lea.sflag [#allocation4], %s488
          %s490 = sand.u32 %s149, 1
          %s491 = smul.addr %s490, 24
          %s492 = scalar_lea.vmem [#allocation8], %s491
          %493 = dma.done %s489, 384
        $region64: #{tpu_custom_call.1} parent=59 // pred_fallthru
          _
      $region60: #{tpu_custom_call.1} parent=5 // pred_fallthru
        _
    $region6: #{tpu_custom_call.1} parent=1 // loop_footer
      %s24 = sadd.s32 1, %s20
    $region7: #{tpu_custom_call.1} parent=1 // loop_footer_branch
      %19 = sbr.rel target = $region3
    $region8: #{tpu_custom_call.1} parent=1 // loop_exit
      _
    %494 = vsyncpa [#allocation3], 1
    %s495 = scalar_lea.sflag [#allocation3], 1
    %496 = vsyncpa %s495, 1
    %497 = vsyncpa [#allocation6], 1
    %s498 = scalar_lea.sflag [#allocation6], 1
    %499 = vsyncpa %s498, 1
    %500 = vsyncpa [#allocation4], 1
    %s501 = scalar_lea.sflag [#allocation4], 1
    %502 = vsyncpa %s501, 1

</llo_original>
